<compile_context>
chip_gen: v5e
topology: v5e:2x2
jax: 0.10.0
libtpu: 0.0.40
codegen_flags: <defaults>
</compile_context>

<pallas_src>
import functools

import jax
import jax.numpy as jnp
from jax.experimental import pallas as pl
from jax.experimental.pallas import tpu as pltpu

_LANES = 128
_SUBLANES = 8
_VMEM_LIMIT_BYTES = 32 * 1024 * 1024


def _cdiv(a, b):
    return -(-a // b)


def _round_up(a, b):
    return _cdiv(a, b) * b


def _as_lane_rows(x):
    """Flatten x row-major and view it as a lane-dense (rows, 128) matrix.

    Keeps the native dtype (no f32 up-cast in HBM).  A zero-pad copy is only
    inserted when x.size is not already a multiple of 128 (or smaller than one
    (8,128) tile); for lane-aligned sizes this is a free metadata reshape.
    Returns (2-D view, original element count).
    """
    flat = jnp.ravel(x)
    n = flat.size
    padded = max(_round_up(max(n, 1), _LANES), _SUBLANES * _LANES)
    if padded != n:
        flat = jnp.pad(flat, (0, padded - n))
    return flat.reshape(padded // _LANES, _LANES), n


# ----------------------------------------------------------------------------
# Kernel A: tiled sum of squared errors (hot path of nn.MSELoss)
# ----------------------------------------------------------------------------
def _sse_kernel(yp_ref, y_ref, out_ref, acc_ref, *, rows, tile_rows,
                blocks_per_split, needs_mask):
    c = pl.program_id(0)          # parallel split (v7x: one per TensorCore)
    i = pl.program_id(1)          # reduction axis

    @pl.when(i == 0)
    def _():
        acc_ref[...] = jnp.zeros_like(acc_ref)

    d = yp_ref[...].astype(jnp.float32) - y_ref[...].astype(jnp.float32)
    sq = d * d
    if needs_mask:
        # Mask rows beyond the (ragged / duplicated-clamped) valid range.
        row0 = (c * blocks_per_split + i) * tile_rows
        rid = row0 + jax.lax.broadcasted_iota(jnp.int32, sq.shape, 0)
        sq = jnp.where(rid < rows, sq, 0.0)

    # Pure elementwise VPU accumulate in the hot loop (no cross-lane reduce,
    # no serializing scalar read-modify-write).
    acc_ref[...] += sq

    @pl.when(i == blocks_per_split - 1)
    def _():
        # One-time sublane-group reduction of the full-tile accumulator down to
        # an (8,128) partial-sum block; final scalar reduce happens in the wrapper.
        r = acc_ref[0:_SUBLANES, :]
        for k in range(1, tile_rows // _SUBLANES):
            r = r + acc_ref[k * _SUBLANES:(k + 1) * _SUBLANES, :]
        out_ref[...] = r


def mse_loss(y_pred, y, *, tile_rows=1024, num_splits=2):
    """Mean squared error, identical semantics to nn.MSELoss() (mean reduction)."""
    yp2d, n = _as_lane_rows(y_pred)
    yt2d, _ = _as_lane_rows(y)
    rows = yp2d.shape[0]                                  # >= 8, lane dim == 128

    # Largest sublane-aligned tile that does not exceed the array.
    tile = min(tile_rows, (rows // _SUBLANES) * _SUBLANES)
    blocks_total = _cdiv(rows, tile)
    splits = min(num_splits, blocks_total)
    bps = _cdiv(blocks_total, splits)                     # blocks per split
    needs_mask = (rows % tile != 0) or (blocks_total % splits != 0)

    def in_map(c, i):
        # Clamp so a (fully masked) trailing duplicate block never DMAs OOB.
        return (jnp.minimum(c * bps + i, blocks_total - 1), 0)

    kernel = functools.partial(_sse_kernel, rows=rows, tile_rows=tile,
                               blocks_per_split=bps, needs_mask=needs_mask)

    partials = pl.pallas_call(
        kernel,
        out_shape=jax.ShapeDtypeStruct((splits * _SUBLANES, _LANES), jnp.float32),
        grid_spec=pltpu.PrefetchScalarGridSpec(
            num_scalar_prefetch=0,
            grid=(splits, bps),
            in_specs=[pl.BlockSpec((tile, _LANES), in_map),
                      pl.BlockSpec((tile, _LANES), in_map)],
            out_specs=pl.BlockSpec((_SUBLANES, _LANES), lambda c, i: (c, 0)),
            scratch_shapes=[pltpu.VMEM((tile, _LANES), jnp.float32)]),
        compiler_params=pltpu.CompilerParams(
            dimension_semantics=("parallel", "arbitrary"),
            vmem_limit_bytes=_VMEM_LIMIT_BYTES),
    )(yp2d, yt2d)

    return jnp.sum(partials) / n


# ----------------------------------------------------------------------------
# Kernel B: tiled sum-of-squares of one recurrent weight (Frobenius norm^2)
# ----------------------------------------------------------------------------
def _sumsq_kernel(w_ref, out_ref, acc_ref, *, rows, tile_rows, needs_mask):
    i = pl.program_id(0)

    @pl.when(i == 0)
    def _():
        acc_ref[...] = jnp.zeros_like(acc_ref)

    w = w_ref[...].astype(jnp.float32)
    sq = w * w
    if needs_mask:
        rid = i * tile_rows + jax.lax.broadcasted_iota(jnp.int32, sq.shape, 0)
        sq = jnp.where(rid < rows, sq, 0.0)
    acc_ref[...] += sq

    @pl.when(i == pl.num_programs(0) - 1)
    def _():
        r = acc_ref[0:_SUBLANES, :]
        for k in range(1, tile_rows // _SUBLANES):
            r = r + acc_ref[k * _SUBLANES:(k + 1) * _SUBLANES, :]
        out_ref[...] = r


def weight_sum_of_squares(w, *, tile_rows=1024):
    w2d, _ = _as_lane_rows(w)
    rows = w2d.shape[0]
    tile = min(tile_rows, (rows // _SUBLANES) * _SUBLANES)
    blocks_total = _cdiv(rows, tile)
    needs_mask = (rows % tile) != 0

    kernel = functools.partial(_sumsq_kernel, rows=rows, tile_rows=tile,
                               needs_mask=needs_mask)
    partials = pl.pallas_call(
        kernel,
        out_shape=jax.ShapeDtypeStruct((_SUBLANES, _LANES), jnp.float32),
        grid_spec=pltpu.PrefetchScalarGridSpec(
            num_scalar_prefetch=0,
            grid=(blocks_total,),
            in_specs=[pl.BlockSpec((tile, _LANES), lambda i: (i, 0))],
            out_specs=pl.BlockSpec((_SUBLANES, _LANES), lambda i: (0, 0)),
            scratch_shapes=[pltpu.VMEM((tile, _LANES), jnp.float32)]),
        compiler_params=pltpu.CompilerParams(
            dimension_semantics=("arbitrary",),
            vmem_limit_bytes=_VMEM_LIMIT_BYTES),
    )(w2d)
    return jnp.sum(partials)


# ----------------------------------------------------------------------------
# Stability_Loss forward (same branching semantics as the PyTorch module)
# ----------------------------------------------------------------------------
def stability_loss(y_pred, y, recurrent_weights, stabelizer=0.0, local_wd=0.0):
    # stabelizer / local_wd are static Python scalars (as in the nn.Module ctor).
    stabl = 0.0 if stabelizer is None else stabelizer
    lwd = 0.0 if local_wd is None else local_wd

    crit_loss = mse_loss(y_pred, y)     # criterion fixed to MSELoss (mean)
    if stabl == 0 and lwd == 0:
        return crit_loss

    # W.norm() == W.norm(p='fro') == sqrt(sum(W**2)); sqrt of the tiny scalar in
    # the wrapper (kernel returns sum-of-squares partials).
    norms = [jnp.sqrt(weight_sum_of_squares(w)) for w in recurrent_weights]

    reg = 0.0
    if lwd != 0:                        # local_weight_decay: sum of norms (init 0)
        wd = 0.0
        for nm in norms:
            wd = wd + nm
        reg = reg + lwd * wd
    if stabl != 0:                      # local_weight_product: product of norms (init 1)
        prod = 1.0
        for nm in norms:
            prod = prod * nm
        reg = reg + stabl * prod
    return crit_loss + reg


if __name__ == "__main__":
    key = jax.random.PRNGKey(0)
    k1, k2, k3, k4, k5, k6 = jax.random.split(key, 6)

    # Autoregressive-network shapes: (batch, seq, channels) prediction and
    # K=2 recurrent weight matrices of shape (hidden, hidden).
    B, T, C, H = 4, 16, 32, 32
    y_pred = jax.random.normal(k1, (B, T, C), jnp.float32)
    y_true = jax.random.normal(k2, (B, T, C), jnp.float32)
    recurrent_weights = [
        0.05 * jax.random.normal(k3, (H, H), jnp.float32),
        0.05 * jax.random.normal(k4, (H, H), jnp.float32),
    ]

    stabl, lwd = 0.1, 0.01
    loss = stability_loss(y_pred, y_true, recurrent_weights,
                          stabelizer=stabl, local_wd=lwd)
    loss = jax.block_until_ready(loss)

    # pure-JAX reference
    ref = jnp.mean((y_pred - y_true) ** 2)
    norms_ref = jnp.array([jnp.sqrt(jnp.sum(w * w)) for w in recurrent_weights])
    ref = ref + lwd * jnp.sum(norms_ref) + stabl * jnp.prod(norms_ref)
    assert jnp.allclose(loss, ref, rtol=1e-5, atol=1e-5), (loss, ref)

    # Extra check 1: ragged tiles + 2-way split + clamped duplicate block path.
    a = jax.random.normal(k5, (4, 5, 128), jnp.float32)          # rows=20
    b = jax.random.normal(k6, (4, 5, 128), jnp.float32)
    got = jax.block_until_ready(mse_loss(a, b, tile_rows=8))
    want = jnp.mean((a - b) ** 2)
    assert jnp.allclose(got, want, rtol=1e-5, atol=1e-5), (got, want)

    # Extra check 2: numel not a multiple of 128 (small zero-pad path).
    a2 = jax.random.normal(k5, (3, 7, 5), jnp.float32)           # 105 elements
    b2 = jax.random.normal(k6, (3, 7, 5), jnp.float32)
    got2 = jax.block_until_ready(mse_loss(a2, b2))
    want2 = jnp.mean((a2 - b2) ** 2)
    assert jnp.allclose(got2, want2, rtol=1e-5, atol=1e-5), (got2, want2)

    print("KERNEL_OK")
</pallas_src>

<mosaic_0001>
module attributes {stable_mosaic.version = 11 : i64} {
  func.func @_sse_kernel(%arg0: i32, %arg1: i32, %arg2: memref<16x128xf32, #tpu.memory_space<vmem>>, %arg3: memref<16x128xf32, #tpu.memory_space<vmem>>, %arg4: memref<8x128xf32, #tpu.memory_space<vmem>>, %arg5: memref<16x128xf32, #tpu.memory_space<vmem>>) attributes {dimension_semantics = [#tpu.dimension_semantics<parallel>, #tpu.dimension_semantics<arbitrary>], iteration_bounds = array<i64: 1, 1>, scalar_prefetch = 0 : i64, scratch_operands = 1 : i64, tpu.core_type = #tpu.core_type<tc>, window_params = [{transform_indices = @transform_0, window_bounds = array<i64: 16, 128>}, {transform_indices = @transform_1, window_bounds = array<i64: 16, 128>}, {transform_indices = @transform_2, window_bounds = array<i64: 8, 128>}]} {
    %c0_i32 = arith.constant 0 : i32
    %0 = arith.cmpi eq, %arg1, %c0_i32 : i32
    %1 = arith.extui %0 : i1 to i32
    %c0_i32_0 = arith.constant 0 : i32
    %2 = arith.cmpi ne, %1, %c0_i32_0 : i32
    scf.if %2 {
      %cst = arith.constant 0.000000e+00 : f32
      %13 = vector.broadcast %cst : f32 to vector<16x128xf32>
      %c0_10 = arith.constant 0 : index
      %c0_11 = arith.constant 0 : index
      %14 = vector.load %arg5[%c0_10, %c0_11] : memref<16x128xf32, #tpu.memory_space<vmem>>, vector<16x128xf32>
      tpu.vector_store %arg5[%c0_10, %c0_11], %13 {strides = array<i32>} : memref<16x128xf32, #tpu.memory_space<vmem>>, vector<16x128xf32>,
    } else {
    }
    %c0 = arith.constant 0 : index
    %c0_1 = arith.constant 0 : index
    %3 = vector.load %arg2[%c0, %c0_1] : memref<16x128xf32, #tpu.memory_space<vmem>>, vector<16x128xf32>
    %c0_2 = arith.constant 0 : index
    %c0_3 = arith.constant 0 : index
    %4 = vector.load %arg3[%c0_2, %c0_3] : memref<16x128xf32, #tpu.memory_space<vmem>>, vector<16x128xf32>
    %5 = arith.subf %3, %4 : vector<16x128xf32>
    %6 = arith.mulf %5, %5 : vector<16x128xf32>
    %c0_4 = arith.constant 0 : index
    %c0_5 = arith.constant 0 : index
    %7 = vector.load %arg5[%c0_4, %c0_5] : memref<16x128xf32, #tpu.memory_space<vmem>>, vector<16x128xf32>
    %8 = arith.addf %7, %6 : vector<16x128xf32>
    %c0_6 = arith.constant 0 : index
    %c0_7 = arith.constant 0 : index
    %9 = vector.load %arg5[%c0_6, %c0_7] : memref<16x128xf32, #tpu.memory_space<vmem>>, vector<16x128xf32>
    tpu.vector_store %arg5[%c0_6, %c0_7], %8 {strides = array<i32>} : memref<16x128xf32, #tpu.memory_space<vmem>>, vector<16x128xf32>,
    %c0_i32_8 = arith.constant 0 : i32
    %10 = arith.cmpi eq, %arg1, %c0_i32_8 : i32
    %11 = arith.extui %10 : i1 to i32
    %c0_i32_9 = arith.constant 0 : i32
    %12 = arith.cmpi ne, %11, %c0_i32_9 : i32
    scf.if %12 {
      %c0_10 = arith.constant 0 : index
      %c0_11 = arith.constant 0 : index
      %13 = vector.load %arg5[%c0_10, %c0_11] : memref<16x128xf32, #tpu.memory_space<vmem>>, vector<8x128xf32>
      %c8 = arith.constant 8 : index
      %c0_12 = arith.constant 0 : index
      %14 = vector.load %arg5[%c8, %c0_12] : memref<16x128xf32, #tpu.memory_space<vmem>>, vector<8x128xf32>
      %15 = arith.addf %13, %14 : vector<8x128xf32>
      %c0_13 = arith.constant 0 : index
      %c0_14 = arith.constant 0 : index
      %16 = vector.load %arg4[%c0_13, %c0_14] : memref<8x128xf32, #tpu.memory_space<vmem>>, vector<8x128xf32>
      tpu.vector_store %arg4[%c0_13, %c0_14], %15 {strides = array<i32>} : memref<8x128xf32, #tpu.memory_space<vmem>>, vector<8x128xf32>,
    } else {
    }
    return
  }
  func.func @transform_0(%arg0: i32, %arg1: i32) -> (i32, i32) {
    %c1_i32 = arith.constant 1 : i32
    %0 = arith.muli %arg0, %c1_i32 : i32
    %1 = arith.addi %0, %arg1 : i32
    %c0_i32 = arith.constant 0 : i32
    %2 = arith.minsi %1, %c0_i32 : i32
    %c0_i32_0 = arith.constant 0 : i32
    %c0_i32_1 = arith.constant 0 : i32
    return %2, %c0_i32_0 : i32, i32
  }
  func.func @transform_1(%arg0: i32, %arg1: i32) -> (i32, i32) {
    %c1_i32 = arith.constant 1 : i32
    %0 = arith.muli %arg0, %c1_i32 : i32
    %1 = arith.addi %0, %arg1 : i32
    %c0_i32 = arith.constant 0 : i32
    %2 = arith.minsi %1, %c0_i32 : i32
    %c0_i32_0 = arith.constant 0 : i32
    %c0_i32_1 = arith.constant 0 : i32
    return %2, %c0_i32_0 : i32, i32
  }
  func.func @transform_2(%arg0: i32, %arg1: i32) -> (i32, i32) {
    %c0_i32 = arith.constant 0 : i32
    %c0_i32_0 = arith.constant 0 : i32
    return %arg0, %c0_i32 : i32, i32
  }
}

</mosaic_0001>

<llo_original>
// kernel: tpu_custom_call.1
$region0: #{tpu_custom_call.1}
  #allocation0 [shape = 'u32[]', space=smem, size = 0x4, offset = 0x4, fixed_abs, tag = 'smem constant byte address 0x4 - core index']
  #allocation1 [shape = 'u32[72,128]{1,0:T(1,128)}', space=vmem, size = 0x9000, scoped, tag = 'internal scratch']
  #allocation2 [shape = 'f32[16,128]{1,0:T(8,128)}', space=vmem, size = 0x2000, scoped, tag = 'scratch operand']
  %s0 = inlined_call_operand.hbm [shape: f32[16,128], index: 0, kind: input, shape index: {}]
  %s1 = inlined_call_operand.hbm [shape: f32[16,128], index: 1, kind: input, shape index: {}]
  %s2 = inlined_call_operand.hbm [shape: f32[8,128], index: 2, kind: output, shape index: {}]
  %s3 = sld [smem:[#allocation0]]
  $region34: #{tpu_custom_call.1} parent=0
    _
  %s5 = ssub.s32 1, %s3
  %s6 = scalar_select 0, %s5, %s3
  $region1: #{tpu_custom_call.1} parent=0
    #allocation3 [shape = 'u8[8192]{0}', space=vmem, size = 0x2000, scoped, tag = 'input window, operand 0, single buffered']
    #allocation4 [shape = 's32[1]{0}', space=sflag, size = 0x4, scoped, tag = 'scoped memory for tpu_custom_call.1']
    #allocation5 [shape = 's32[1]{0}', space=sflag, size = 0x4, scoped, tag = 'scoped memory for tpu_custom_call.1']
    #allocation6 [shape = 'u8[8192]{0}', space=vmem, size = 0x2000, scoped, tag = 'input window, operand 1, single buffered']
    #allocation7 [shape = 's32[1]{0}', space=sflag, size = 0x4, scoped, tag = 'scoped memory for tpu_custom_call.1']
    #allocation8 [shape = 'u8[4096]{0}', space=vmem, size = 0x1000, scoped, tag = 'output window, operand 0, single buffered']
    %7 = vsyncpa [#allocation4], 0
    %8 = vsyncpa [#allocation7], 0
    %9 = vsyncpa [#allocation5], 0
    // Predicated region
    $region2: #{tpu_custom_call.1} parent=1 // pred_check
      _
    $region3: #{tpu_custom_call.1} parent=1 // pred_check_branch
      %11 = sbr.rel (0) target = $region5
    $region4: #{tpu_custom_call.1} parent=1 // pred_region
      %s12 = sadd.s32 0, 0
      %p13 = scmp.lt.s32.totalorder %s12, 0
      %s14 = scalar_select %p13, %s12, 0
      %s15 = smul.u32 2, %s14
      %17 = vsyncadd [#allocation4], 0
      %s18 = smul.addr %s15, 8
      %s19 = scalar_lea.hbm %s0, %s18
      %s20 = sshll.u32 %s19, 4
      %s21 = int_to_ptr.hbm [resolvable:$true] %s20
      %s22 = sshll.u32 [#allocation3], 4
      %s23 = int_to_ptr.vmem [resolvable:$true] %s22
      %28 = dma.hbm_to_vmem [thread:$0]  %s21, 256, %s23, [#allocation4], 128, 128, 8
    $region5: #{tpu_custom_call.1} parent=1 // pred_fallthru
      _
    // Predicated region
    $region6: #{tpu_custom_call.1} parent=1 // pred_check
      _
    $region7: #{tpu_custom_call.1} parent=1 // pred_check_branch
      %30 = sbr.rel (0) target = $region9
    $region8: #{tpu_custom_call.1} parent=1 // pred_region
      %s31 = sadd.s32 0, 0
      %p32 = scmp.lt.s32.totalorder %s31, 0
      %s33 = scalar_select %p32, %s31, 0
      %s34 = smul.u32 2, %s33
      %36 = vsyncadd [#allocation7], 0
      %s37 = smul.addr %s34, 8
      %s38 = scalar_lea.hbm %s1, %s37
      %s39 = sshll.u32 %s38, 4
      %s40 = int_to_ptr.hbm [resolvable:$true] %s39
      %s41 = sshll.u32 [#allocation6], 4
      %s42 = int_to_ptr.vmem [resolvable:$true] %s41
      %47 = dma.hbm_to_vmem [thread:$0]  %s40, 256, %s42, [#allocation7], 128, 128, 8
    $region9: #{tpu_custom_call.1} parent=1 // pred_fallthru
      _
    // Predicated region
    $region10: #{tpu_custom_call.1} parent=1 // pred_check
      _
    $region11: #{tpu_custom_call.1} parent=1 // pred_check_branch
      %49 = sbr.rel (0) target = $region13
    $region12: #{tpu_custom_call.1} parent=1 // pred_region
      %51 = dma.done [#allocation4], 256
    $region13: #{tpu_custom_call.1} parent=1 // pred_fallthru
      _
    // Predicated region
    $region14: #{tpu_custom_call.1} parent=1 // pred_check
      _
    $region15: #{tpu_custom_call.1} parent=1 // pred_check_branch
      %53 = sbr.rel (0) target = $region17
    $region16: #{tpu_custom_call.1} parent=1 // pred_region
      %55 = dma.done [#allocation7], 256
    $region17: #{tpu_custom_call.1} parent=1 // pred_fallthru
      _
    %s56 = sadd.s32 0, 0
    %p57 = scmp.lt.s32.totalorder %s56, 0
    %s58 = scalar_select %p57, %s56, 0
    %s59 = smul.u32 2, %s58
    %s60 = sadd.s32 0, 0
    %p61 = scmp.lt.s32.totalorder %s60, 0
    %s62 = scalar_select %p61, %s60, 0
    %s63 = smul.u32 2, %s62
    %p64 = scmp.eq.s32.totalorder 0, 0
    // Predicated region
    $region18: #{tpu_custom_call.1} parent=1 // pred_check
      %p65 = pneg %p64
    $region19: #{tpu_custom_call.1} parent=1 // pred_check_branch
      %67 = sbr.rel (%p65) target = $region21
    $region20: #{tpu_custom_call.1} parent=1 // pred_region
      %68 = vst [vmem:[#allocation2] sm:$0xff] 0.0
      %69 = vst [vmem:[#allocation2 + $0x8] sm:$0xff] 0.0
    $region21: #{tpu_custom_call.1} parent=1 // pred_fallthru
      _
    %v70 = vld [vmem:[#allocation3] sm:$0xff]
    %v71 = vld [vmem:[#allocation3 + $0x8] sm:$0xff]
    %v72 = vld [vmem:[#allocation6] sm:$0xff]
    %v73 = vld [vmem:[#allocation6 + $0x8] sm:$0xff]
    %v74 = vsub.f32 %v70, %v72
    %v75 = vsub.f32 %v71, %v73
    %v76 = vmul.f32 %v74, %v74
    %v77 = vmul.f32 %v75, %v75
    %v78 = vld [vmem:[#allocation2] sm:$0xff]
    %v79 = vld [vmem:[#allocation2 + $0x8] sm:$0xff]
    %v80 = vadd.f32 %v78, %v76
    %v81 = vadd.f32 %v79, %v77
    %82 = vst [vmem:[#allocation2] sm:$0xff] %v80
    %83 = vst [vmem:[#allocation2 + $0x8] sm:$0xff] %v81
    // Predicated region
    $region22: #{tpu_custom_call.1} parent=1 // pred_check
      %p84 = pneg %p64
    $region23: #{tpu_custom_call.1} parent=1 // pred_check_branch
      %86 = sbr.rel (%p84) target = $region25
    $region24: #{tpu_custom_call.1} parent=1 // pred_region
      %v87 = vld [vmem:[#allocation2] sm:$0xff]
      %v88 = vld [vmem:[#allocation2 + $0x8] sm:$0xff]
      %v89 = vadd.f32 %v87, %v88
      %90 = vst [vmem:[#allocation8] sm:$0xff] %v89
    $region25: #{tpu_custom_call.1} parent=1 // pred_fallthru
      _
    // Predicated region
    $region26: #{tpu_custom_call.1} parent=1 // pred_check
      _
    $region27: #{tpu_custom_call.1} parent=1 // pred_check_branch
      %92 = sbr.rel (0) target = $region29
    $region28: #{tpu_custom_call.1} parent=1 // pred_region
      %94 = vsyncadd [#allocation5], 0
      %s96 = sshll.u32 [#allocation8], 4
      %s97 = int_to_ptr.vmem [resolvable:$true] %s96
      %s98 = sshll.u32 %s2, 4
      %s99 = int_to_ptr.hbm [resolvable:$true] %s98
      %101 = dma.vmem_to_hbm [thread:$0]  %s97, 128, %s99, [#allocation5]
    $region29: #{tpu_custom_call.1} parent=1 // pred_fallthru
      _
    // Predicated region
    $region30: #{tpu_custom_call.1} parent=1 // pred_check
      _
    $region31: #{tpu_custom_call.1} parent=1 // pred_check_branch
      %103 = sbr.rel (0) target = $region33
    $region32: #{tpu_custom_call.1} parent=1 // pred_region
      %105 = dma.done [#allocation5], 128
    $region33: #{tpu_custom_call.1} parent=1 // pred_fallthru
      _
    %106 = vsyncpa [#allocation4], 1
    %107 = vsyncpa [#allocation7], 1
    %108 = vsyncpa [#allocation5], 1

</llo_original>
